<compile_context>
chip_gen: v7x
topology: tpu7x:2x2x1
jax: 0.10.0
libtpu: 0.0.40
codegen_flags: <defaults>
</compile_context>

<pallas_src>
import jax
import jax.numpy as jnp
from jax import lax
from jax.experimental import pallas as pl
from jax.experimental.pallas import tpu as pltpu


# -----------------------------------------------------------------------------
# Kernel 1: non-recurrent input projection
#   GI = X2d @ W_ih_cat + (b_ih_cat + b_hh[r], b_hh[z] pre-folded, 0 for n-gate)
# -----------------------------------------------------------------------------
def input_proj_kernel(x_ref, w_ref, b_ref, out_ref):
    out_ref[...] = (
        jnp.dot(x_ref[...], w_ref[...], preferred_element_type=jnp.float32)
        + b_ref[...]
    )


# -----------------------------------------------------------------------------
# Kernel 2: GRU recurrence + masked mean pooling, whole sequence in ONE grid step
# -----------------------------------------------------------------------------
def gru_recurrence_kernel(gi_ref, whh_ref, bhhn_ref, mask_ref, invlen_ref, out_ref):
    T, B, _ = gi_ref.shape
    H = out_ref.shape[1]

    whh = whh_ref[...]     # (H, 3H) fused hidden weights, hoisted out of the loop
    bhhn = bhhn_ref[...]   # (1, H)  b_hh for the n-gate (cannot be pre-folded)

    def step(t, carry):
        h, acc = carry                       # (B, H) f32 each
        gi = gi_ref[t]                       # (B, 3H): x proj + b_ih (+ b_hh r,z)
        gh = jnp.dot(h, whh, preferred_element_type=jnp.float32)   # (B, 3H)
        # PyTorch GRU gate order (r, z, n), static lane slices of the fused result
        r = jax.nn.sigmoid(gi[:, 0:H] + gh[:, 0:H])
        z = jax.nn.sigmoid(gi[:, H:2 * H] + gh[:, H:2 * H])
        n = jnp.tanh(gi[:, 2 * H:] + r * (gh[:, 2 * H:] + bhhn))
        h_new = (1.0 - z) * n + z * h
        # pack_padded_sequence semantics: hidden freezes past each length and
        # padded steps contribute 0 to the pooled sum.  m is f32 in {0, 1};
        # m * h_new is shared between the freeze and the accumulator.
        m = mask_ref[t]                      # (B, 1)
        hn_m = m * h_new
        h = hn_m + (1.0 - m) * h
        acc = acc + hn_m
        return h, acc

    h0 = jnp.zeros((B, H), jnp.float32)
    acc0 = jnp.zeros((B, H), jnp.float32)
    # T is a static shape -> fully unrolled: the LLO scheduler can overlap the
    # MXU push of step t+1 with the VPU/EUP gate math of step t.
    _, acc = lax.fori_loop(0, T, step, (h0, acc0), unroll=True)

    # pooling == 'mean': sum of valid outputs * (1 / len), reciprocal precomputed
    out_ref[...] = acc * invlen_ref[...]
    # TODO(synk): 'last' / 'mean_last' pooling would additionally emit the frozen
    #             final hidden state h; only pooling == 'mean' is emitted here.


# -----------------------------------------------------------------------------
# Wrapper
# -----------------------------------------------------------------------------
def gru_txt_encoder_pallas(x_emb_tbd, lengths, w_ih, w_hh, b_ih, b_hh):
    """x_emb_tbd: (T, B, D) f32 time-major embedded captions.
    lengths: (B,) int32.  w_ih: (3, D, H), w_hh: (3, H, H), b_*: (3, 1, H)
    with PyTorch gate order (r, z, n)."""
    T, B, D = x_emb_tbd.shape
    H = w_hh.shape[-1]

    # ---- host-side weight / bias layout prep (plumbing, not compute) ----
    w_ih_cat = jnp.transpose(w_ih, (1, 0, 2)).reshape(D, 3 * H)   # (D, 3H)
    w_hh_cat = jnp.transpose(w_hh, (1, 0, 2)).reshape(H, 3 * H)   # (H, 3H)
    b_ih_cat = jnp.transpose(b_ih, (1, 0, 2)).reshape(1, 3 * H)   # (1, 3H)
    b_hh_cat = jnp.transpose(b_hh, (1, 0, 2)).reshape(1, 3 * H)   # (1, 3H)
    # b_hh for r,z can be folded into GI; b_hh for n must stay inside r*(...)
    b_gi = b_ih_cat + b_hh_cat.at[:, 2 * H:].set(0.0)             # (1, 3H)
    b_hhn = b_hh[2]                                               # (1, H)

    # ---- kernel 1: one bulk matmul over all T*B rows (off the serial path) ----
    x2d = x_emb_tbd.reshape(T * B, D)
    gi2d = pl.pallas_call(
        input_proj_kernel,
        out_shape=jax.ShapeDtypeStruct((T * B, 3 * H), jnp.float32),
        grid=(1,),
        in_specs=[
            pl.BlockSpec((T * B, D), lambda i: (0, 0)),
            pl.BlockSpec((D, 3 * H), lambda i: (0, 0)),
            pl.BlockSpec((1, 3 * H), lambda i: (0, 0)),
        ],
        out_specs=pl.BlockSpec((T * B, 3 * H), lambda i: (0, 0)),
        compiler_params=pltpu.CompilerParams(dimension_semantics=("arbitrary",)),
    )(x2d, w_ih_cat, b_gi)
    gi = gi2d.reshape(T, B, 3 * H)

    # ---- host-side mask / inverse length (removes per-step compares and the
    #      finalize divide from the kernel; clamp avoids 0/0 for empty captions)
    pos = jnp.arange(T, dtype=jnp.int32)[:, None, None]               # (T, 1, 1)
    mask_f = (pos < lengths[None, :, None]).astype(jnp.float32)       # (T, B, 1)
    inv_len = (1.0 / jnp.maximum(lengths, 1).astype(jnp.float32))[:, None]  # (B, 1)

    # ---- kernel 2: the serial recurrence (single grid step, loop inside) ----
    out = pl.pallas_call(
        gru_recurrence_kernel,
        out_shape=jax.ShapeDtypeStruct((B, H), jnp.float32),
        grid=(1,),
        in_specs=[
            pl.BlockSpec((T, B, 3 * H), lambda i: (0, 0, 0)),   # GI (all timesteps)
            pl.BlockSpec((H, 3 * H), lambda i: (0, 0)),         # fused W_hh
            pl.BlockSpec((1, H), lambda i: (0, 0)),             # b_hh[n]
            pl.BlockSpec((T, B, 1), lambda i: (0, 0, 0)),       # f32 validity mask
            pl.BlockSpec((B, 1), lambda i: (0, 0)),             # 1 / length
        ],
        out_specs=pl.BlockSpec((B, H), lambda i: (0, 0)),
        compiler_params=pltpu.CompilerParams(dimension_semantics=("arbitrary",)),
    )(gi, w_hh_cat, b_hhn, mask_f, inv_len)
    return out


# -----------------------------------------------------------------------------
# Pure-JAX reference (GRU + packed-sequence mean pooling, PyTorch conventions)
# -----------------------------------------------------------------------------
def ref_forward(x_emb_btd, lengths, w_ih, w_hh, b_ih, b_hh):
    B, T, D = x_emb_btd.shape
    H = w_hh.shape[-1]
    h = jnp.zeros((B, H), jnp.float32)
    acc = jnp.zeros((B, H), jnp.float32)
    for t in range(T):
        x_t = x_emb_btd[:, t, :]
        gi_r = x_t @ w_ih[0] + b_ih[0]
        gi_z = x_t @ w_ih[1] + b_ih[1]
        gi_n = x_t @ w_ih[2] + b_ih[2]
        gh_r = h @ w_hh[0] + b_hh[0]
        gh_z = h @ w_hh[1] + b_hh[1]
        gh_n = h @ w_hh[2] + b_hh[2]
        r = jax.nn.sigmoid(gi_r + gh_r)
        z = jax.nn.sigmoid(gi_z + gh_z)
        n = jnp.tanh(gi_n + r * gh_n)
        h_new = (1.0 - z) * n + z * h
        mask = (t < lengths)[:, None]
        h = jnp.where(mask, h_new, h)
        acc = acc + jnp.where(mask, h_new, 0.0)
    return acc / lengths[:, None].astype(jnp.float32)


if __name__ == "__main__":
    # opt-equivalent hyperparameters (small, TPU-friendly)
    VOCAB = 50      # len(opt.t2v_idx.vocab)
    WE_DIM = 32     # opt.we_dim
    RNN_SIZE = 32   # opt.rnn_size (opt.rnn_layer = 1, pooling = 'mean')
    B = 2
    lengths = jnp.array([8, 5], dtype=jnp.int32)
    T = int(lengths.max())

    key = jax.random.PRNGKey(0)
    k_emb, k_tok, k_wi, k_wh, k_bi, k_bh = jax.random.split(key, 6)

    # parameters (deterministic synthetic init, PyTorch-like uniform for GRU)
    emb_table = jax.random.normal(k_emb, (VOCAB, WE_DIM), jnp.float32) * 0.1
    bound = 1.0 / jnp.sqrt(jnp.float32(RNN_SIZE))
    w_ih = jax.random.uniform(k_wi, (3, WE_DIM, RNN_SIZE), jnp.float32, -bound, bound)
    w_hh = jax.random.uniform(k_wh, (3, RNN_SIZE, RNN_SIZE), jnp.float32, -bound, bound)
    b_ih = jax.random.uniform(k_bi, (3, 1, RNN_SIZE), jnp.float32, -bound, bound)
    b_hh = jax.random.uniform(k_bh, (3, 1, RNN_SIZE), jnp.float32, -bound, bound)

    # synthetic "encoded captions": token ids, zero-padded past each length
    # TODO(synk): t2v_idx.encoding (string tokenization) has no Pallas equivalent;
    #             synthetic ids stand in for it.
    tok = jax.random.randint(k_tok, (B, T), 1, VOCAB, dtype=jnp.int32)
    pos = jnp.arange(T, dtype=jnp.int32)[None, :]
    tok = jnp.where(pos < lengths[:, None], tok, 0)   # x[i, :end] = vec; rest 0

    # glue: embedding lookup (self.we) in plain JAX, then time-major layout
    x_emb_btd = emb_table[tok]                         # (B, T, D)
    x_emb_tbd = jnp.transpose(x_emb_btd, (1, 0, 2))    # (T, B, D)

    out = gru_txt_encoder_pallas(x_emb_tbd, lengths, w_ih, w_hh, b_ih, b_hh)
    out = jax.block_until_ready(out)

    ref = ref_forward(x_emb_btd, lengths, w_ih, w_hh, b_ih, b_hh)
    assert out.shape == (B, RNN_SIZE)
    assert jnp.allclose(out, ref, atol=1e-5, rtol=1e-5), "mismatch vs JAX reference"

    print("KERNEL_OK")
</pallas_src>

<mosaic_0001>
module attributes {stable_mosaic.version = 11 : i64} {
  func.func @input_proj_kernel(%arg0: i32, %arg1: memref<16x32xf32, #tpu.memory_space<vmem>>, %arg2: memref<32x96xf32, #tpu.memory_space<vmem>>, %arg3: memref<1x96xf32, #tpu.memory_space<vmem>>, %arg4: memref<16x96xf32, #tpu.memory_space<vmem>>) attributes {dimension_semantics = [#tpu.dimension_semantics<arbitrary>], iteration_bounds = array<i64: 1>, scalar_prefetch = 0 : i64, scratch_operands = 0 : i64, tpu.core_type = #tpu.core_type<tc>, window_params = [{pipeline_mode = #tpu.pipeline_mode<synchronous>, transform_indices = @transform_0, window_bounds = array<i64: 16, 32>}, {pipeline_mode = #tpu.pipeline_mode<synchronous>, transform_indices = @transform_1, window_bounds = array<i64: 32, 96>}, {pipeline_mode = #tpu.pipeline_mode<synchronous>, transform_indices = @transform_2, window_bounds = array<i64: 1, 96>}, {pipeline_mode = #tpu.pipeline_mode<synchronous>, transform_indices = @transform_3, window_bounds = array<i64: 16, 96>}]} {
    %c0 = arith.constant 0 : index
    %c0_0 = arith.constant 0 : index
    %0 = vector.load %arg1[%c0, %c0_0] : memref<16x32xf32, #tpu.memory_space<vmem>>, vector<16x32xf32>
    %c0_1 = arith.constant 0 : index
    %c0_2 = arith.constant 0 : index
    %1 = vector.load %arg2[%c0_1, %c0_2] : memref<32x96xf32, #tpu.memory_space<vmem>>, vector<32x96xf32>
    %cst = arith.constant dense<0.000000e+00> : vector<16x96xf32>
    %2 = tpu.matmul %0, %1, %cst {dimension_numbers = #tpu.dot_dimension_numbers<[1], [0], [0], [1], [0, 0, 1, 1], [], []>} : vector<16x32xf32>, vector<32x96xf32>, vector<16x96xf32> -> vector<16x96xf32>
    %c0_3 = arith.constant 0 : index
    %c0_4 = arith.constant 0 : index
    %3 = vector.load %arg3[%c0_3, %c0_4] : memref<1x96xf32, #tpu.memory_space<vmem>>, vector<1x96xf32>
    %4 = vector.broadcast %3 : vector<1x96xf32> to vector<16x96xf32>
    %5 = arith.addf %2, %4 : vector<16x96xf32>
    %c0_5 = arith.constant 0 : index
    %c0_6 = arith.constant 0 : index
    %6 = vector.load %arg4[%c0_5, %c0_6] : memref<16x96xf32, #tpu.memory_space<vmem>>, vector<16x96xf32>
    tpu.vector_store %arg4[%c0_5, %c0_6], %5 {strides = array<i32>} : memref<16x96xf32, #tpu.memory_space<vmem>>, vector<16x96xf32>,
    return
  }
  func.func @transform_0(%arg0: i32) -> (i32, i32) {
    %c0_i32 = arith.constant 0 : i32
    %c0_i32_0 = arith.constant 0 : i32
    %c0_i32_1 = arith.constant 0 : i32
    return %c0_i32, %c0_i32_0 : i32, i32
  }
  func.func @transform_1(%arg0: i32) -> (i32, i32) {
    %c0_i32 = arith.constant 0 : i32
    %c0_i32_0 = arith.constant 0 : i32
    %c0_i32_1 = arith.constant 0 : i32
    return %c0_i32, %c0_i32_0 : i32, i32
  }
  func.func @transform_2(%arg0: i32) -> (i32, i32) {
    %c0_i32 = arith.constant 0 : i32
    %c0_i32_0 = arith.constant 0 : i32
    %c0_i32_1 = arith.constant 0 : i32
    return %c0_i32, %c0_i32_0 : i32, i32
  }
  func.func @transform_3(%arg0: i32) -> (i32, i32) {
    %c0_i32 = arith.constant 0 : i32
    %c0_i32_0 = arith.constant 0 : i32
    %c0_i32_1 = arith.constant 0 : i32
    return %c0_i32, %c0_i32_0 : i32, i32
  }
}

</mosaic_0001>

<llo_original>
// kernel: tpu_custom_call.1
$region0: #{tpu_custom_call.1}
  #allocation0 [shape = 'u32[]', space=smem, size = 0x4, offset = 0x4, fixed_abs, tag = 'smem constant byte address 0x4 - core index']
  #allocation1 [shape = 'u32[144,128]{1,0:T(1,128)}', space=vmem, size = 0x12000, scoped, tag = 'internal scratch']
  %s0 = inlined_call_operand.hbm [shape: f32[16,32], index: 0, kind: input, shape index: {}]
  %s1 = inlined_call_operand.hbm [shape: f32[32,96], index: 1, kind: input, shape index: {}]
  %s2 = inlined_call_operand.vmem [shape: f32[1,96], index: 2, kind: input, shape index: {}]
  %s3 = inlined_call_operand.hbm [shape: f32[16,96], index: 3, kind: output, shape index: {}]
  %s4 = sld [smem:[#allocation0]]
  $region30: #{tpu_custom_call.1} parent=0
    _
  %s6 = ssub.s32 1, %s4
  %s7 = scalar_select 0, %s6, %s4
  $region1: #{tpu_custom_call.1} parent=0
    #allocation2 [shape = 'u8[8192]{0}', space=vmem, size = 0x2000, scoped, tag = 'input window, operand 0, single buffered']
    #allocation3 [shape = 's32[1]{0}', space=sflag, size = 0x4, scoped, tag = 'scoped memory for tpu_custom_call.1']
    #allocation4 [shape = 's32[1]{0}', space=sflag, size = 0x4, scoped, tag = 'scoped memory for tpu_custom_call.1']
    #allocation5 [shape = 'u8[16384]{0}', space=vmem, size = 0x4000, scoped, tag = 'input window, operand 1, single buffered']
    #allocation6 [shape = 's32[1]{0}', space=sflag, size = 0x4, scoped, tag = 'scoped memory for tpu_custom_call.1']
    #allocation7 [shape = 'u8[8192]{0}', space=vmem, size = 0x2000, scoped, tag = 'output window, operand 0, single buffered']
    %8 = vsyncpa [#allocation3], 0
    %9 = vsyncpa [#allocation6], 0
    %10 = vsyncpa [#allocation4], 0
    // Predicated region
    $region2: #{tpu_custom_call.1} parent=1 // pred_check
      _
    $region3: #{tpu_custom_call.1} parent=1 // pred_check_branch
      %12 = sbr.rel (0) target = $region5
    $region4: #{tpu_custom_call.1} parent=1 // pred_region
      %s14 = ssub.s32 256, 256
      %15 = vsyncadd [#allocation3], %s14
      %s16 = sshll.u32 [#allocation2], 4
      %s17 = int_to_ptr.vmem [resolvable:$true] %s16
      %22 = dma.hbm_to_vmem [thread:$0]  %s0, 256, %s17, [#allocation3], 128, 128, 8
    $region5: #{tpu_custom_call.1} parent=1 // pred_fallthru
      _
    // Predicated region
    $region6: #{tpu_custom_call.1} parent=1 // pred_check
      _
    $region7: #{tpu_custom_call.1} parent=1 // pred_check_branch
      %24 = sbr.rel (0) target = $region9
    $region8: #{tpu_custom_call.1} parent=1 // pred_region
      %s26 = ssub.s32 512, 512
      %27 = vsyncadd [#allocation6], %s26
      %s28 = sshll.u32 [#allocation5], 4
      %s29 = int_to_ptr.vmem [resolvable:$true] %s28
      %34 = dma.hbm_to_vmem [thread:$0]  %s1, 512, %s29, [#allocation6], 128, 128, 8
    $region9: #{tpu_custom_call.1} parent=1 // pred_fallthru
      _
    // Predicated region
    $region10: #{tpu_custom_call.1} parent=1 // pred_check
      _
    $region11: #{tpu_custom_call.1} parent=1 // pred_check_branch
      %36 = sbr.rel (0) target = $region13
    $region12: #{tpu_custom_call.1} parent=1 // pred_region
      _
    $region13: #{tpu_custom_call.1} parent=1 // pred_fallthru
      _
    // Predicated region
    $region14: #{tpu_custom_call.1} parent=1 // pred_check
      _
    $region15: #{tpu_custom_call.1} parent=1 // pred_check_branch
      %38 = sbr.rel (0) target = $region17
    $region16: #{tpu_custom_call.1} parent=1 // pred_region
      %39 = dma.done [#allocation3], 256
    $region17: #{tpu_custom_call.1} parent=1 // pred_fallthru
      _
    // Predicated region
    $region18: #{tpu_custom_call.1} parent=1 // pred_check
      _
    $region19: #{tpu_custom_call.1} parent=1 // pred_check_branch
      %41 = sbr.rel (0) target = $region21
    $region20: #{tpu_custom_call.1} parent=1 // pred_region
      %42 = dma.done [#allocation6], 512
    $region21: #{tpu_custom_call.1} parent=1 // pred_fallthru
      _
    %v43 = vld [vmem:[#allocation2] sm:$0xff]
    %v44 = vld [vmem:[#allocation2 + $0x8] sm:$0xff]
    %v45 = vld [vmem:[#allocation5] sm:$0xff]
    %v46 = vld [vmem:[#allocation5 + $0x8] sm:$0xff]
    %v47 = vld [vmem:[#allocation5 + $0x10] sm:$0xff]
    %v48 = vld [vmem:[#allocation5 + $0x18] sm:$0xff]
    %v49 = vld [vmem:[%s2] sm:$0x1]
    %v51 = vlaneseq
    %v52 = vshrl.u32 %v51, 7
    %v53 = vsub.s32 0, %v52
    %v54 = vrot.slane %v49, %v53
    %vm56 = vcmask 261120
    %v58 = vsel %vm56, %v43, 0
    %v61 = vsel %vm56, %v44, 0
    %63 = vmatprep.subr.mxu0 0.0
    %64 = vmatpush1.msra.mxu0 %v45
    %65 = vmatprep.subr.mxu0 0.0
    %66 = vmatpush1.msra.mxu0 %v46
    %67 = vmatprep.subr.mxu0 0.0
    %68 = vmatpush1.msra.mxu0 %v47
    %69 = vmatprep.subr.mxu0 0.0
    %70 = vmatpush1.msra.mxu0 %v48
    %71 = vmatprep.subr.mxu0 0.0
    %72 = vmatpush1.msra.mxu0 0.0
    %73 = vmatprep.subr.mxu0 0.0
    %74 = vmatpush1.msra.mxu0 0.0
    %75 = vmatprep.subr.mxu0 0.0
    %76 = vmatpush1.msra.mxu0 0.0
    %77 = vmatprep.subr.mxu0 0.0
    %78 = vmatpush1.msra.mxu0 0.0
    %79 = vmatprep.subr.mxu0 0.0
    %80 = vmatpush1.msra.mxu0 0.0
    %81 = vmatprep.subr.mxu0 0.0
    %82 = vmatpush1.msra.mxu0 0.0
    %83 = vmatprep.subr.mxu0 0.0
    %84 = vmatpush1.msra.mxu0 0.0
    %85 = vmatprep.subr.mxu0 0.0
    %86 = vmatpush1.msra.mxu0 0.0
    %87 = vmatprep.subr.mxu0 0.0
    %88 = vmatpush1.msra.mxu0 0.0
    %89 = vmatprep.subr.mxu0 0.0
    %90 = vmatpush1.msra.mxu0 0.0
    %91 = vmatprep.subr.mxu0 0.0
    %92 = vmatpush1.msra.mxu0 0.0
    %93 = vmatprep.subr.mxu0 0.0
    %94 = vmatpush1.msra.mxu0 0.0
    %95 = vmatprep.subr.mxu0 0.0
    %96 = vmatpush1.msra.mxu0 0.0
    %97 = vmatprep.subr.mxu0 0.0
    %98 = vmatpush1.msra.mxu0 0.0
    %99 = vmatprep.subr.mxu0 0.0
    %100 = vmatpush1.msra.mxu0 0.0
    %101 = vmatprep.subr.mxu0 0.0
    %102 = vmatpush1.msra.mxu0 0.0
    %103 = vmatprep.subr.mxu0 0.0
    %104 = vmatpush1.msra.mxu0 0.0
    %105 = vmatprep.subr.mxu0 0.0
    %106 = vmatpush1.msra.mxu0 0.0
    %107 = vmatprep.subr.mxu0 0.0
    %108 = vmatpush1.msra.mxu0 0.0
    %109 = vmatprep.subr.mxu0 0.0
    %110 = vmatpush1.msra.mxu0 0.0
    %111 = vmatprep.subr.mxu0 0.0
    %112 = vmatpush1.msra.mxu0 0.0
    %113 = vmatprep.subr.mxu0 0.0
    %114 = vmatpush1.msra.mxu0 0.0
    %115 = vmatprep.subr.mxu0 0.0
    %116 = vmatpush1.msra.mxu0 0.0
    %117 = vmatprep.subr.mxu0 0.0
    %118 = vmatpush1.msra.mxu0 0.0
    %119 = vmatprep.subr.mxu0 0.0
    %120 = vmatpush1.msra.mxu0 0.0
    %121 = vmatprep.subr.mxu0 0.0
    %122 = vmatpush1.msra.mxu0 0.0
    %123 = vmatprep.subr.mxu0 0.0
    %124 = vmatpush1.msra.mxu0 0.0
    %125 = vmatprep.subr.mxu0 0.0
    %126 = vmatpush1.msra.mxu0 0.0
    %127 = vmatprep.mubr.f32.mxu0 0.0
    %128 = vmatmul.mubr.f32.gmra.mrb[0].mxu0 %v58
    %v129 = vpop.f32.mrb[0].mxu0
    %v130 = vadd.f32 %v54, %v129
    %v131 = vpop.f32.mrb[0].mxu0
    %132 = vmatprep.mubr.f32.mxu0 0.0
    %133 = vmatmul.mubr.f32.gmra.mrb[0].mxu0 %v61
    %v134 = vpop.f32.mrb[0].mxu0
    %v135 = vadd.f32 %v54, %v134
    %v136 = vpop.f32.mrb[0].mxu0
    %137 = vdwg.mxu0
    %vm138 = vcmask 785408
    %139 = vst.msk [vmem:[#allocation7] sm:$0xff] %vm138, %v130
    %140 = vst.msk [vmem:[#allocation7 + $0x8] sm:$0xff] %vm138, %v135
    // Predicated region
    $region22: #{tpu_custom_call.1} parent=1 // pred_check
      _
    $region23: #{tpu_custom_call.1} parent=1 // pred_check_branch
      %142 = sbr.rel (0) target = $region25
    $region24: #{tpu_custom_call.1} parent=1 // pred_region
      %s144 = ssub.s32 256, 256
      %145 = vsyncadd [#allocation4], %s144
      %s146 = sshll.u32 [#allocation7], 4
      %s147 = int_to_ptr.vmem [resolvable:$true] %s146
      %152 = dma.vmem_to_hbm [thread:$0]  %s147, 256, %s3, [#allocation4], 128, 128, 8
    $region25: #{tpu_custom_call.1} parent=1 // pred_fallthru
      _
    // Predicated region
    $region26: #{tpu_custom_call.1} parent=1 // pred_check
      _
    $region27: #{tpu_custom_call.1} parent=1 // pred_check_branch
      %154 = sbr.rel (0) target = $region29
    $region28: #{tpu_custom_call.1} parent=1 // pred_region
      %155 = dma.done [#allocation4], 256
    $region29: #{tpu_custom_call.1} parent=1 // pred_fallthru
      _
    %156 = vsyncpa [#allocation3], 1
    %157 = vsyncpa [#allocation6], 1
    %158 = vsyncpa [#allocation4], 1

</llo_original>
